<compile_context>
chip_gen: v7x
topology: tpu7x:2x2x1
jax: 0.10.0
libtpu: 0.0.40
codegen_flags: <defaults>
</compile_context>

<pallas_src>
import functools

import numpy as np
import jax
import jax.numpy as jnp
from jax.experimental import pallas as pl
from jax.experimental.pallas import tpu as pltpu


def _dma_copy_kernel(x_ref, o_ref, sem):
    # One HBM->HBM DMA for the whole tensor: no VMEM staging, no lane
    # constraints, near-zero VMEM footprint.
    cp = pltpu.make_async_copy(x_ref, o_ref, sem)
    cp.start()
    cp.wait()


@functools.partial(jax.jit, static_argnums=1)
def _pallas_reshape_impl(x, outer_shape):
    out_shape = (x.shape[0],) + tuple(outer_shape)

    # Metadata-only bitcast view to the target shape; the kernel output is
    # then directly the final result (no extra passes over the data).
    x_view = jnp.reshape(x, out_shape)

    return pl.pallas_call(
        _dma_copy_kernel,
        out_shape=jax.ShapeDtypeStruct(out_shape, x.dtype),
        in_specs=[pl.BlockSpec(memory_space=pl.ANY)],
        out_specs=pl.BlockSpec(memory_space=pl.ANY),
        scratch_shapes=[pltpu.SemaphoreType.DMA],
    )(x_view)


def pallas_reshape(x, outer_shape):
    """Equivalent of torch: x.view(x.size(0), *outer_shape)."""
    outer_shape = tuple(int(d) for d in outer_shape)
    n_in = int(np.prod(x.shape[1:])) if x.ndim > 1 else 1
    n_out = int(np.prod(outer_shape)) if len(outer_shape) > 0 else 1
    if n_in != n_out:
        raise ValueError(
            f"cannot reshape trailing size {n_in} into {outer_shape} (= {n_out})"
        )
    return _pallas_reshape_impl(x, outer_shape)


if __name__ == "__main__":
    key = jax.random.PRNGKey(0)

    # --- case 1: NCHW (2, 4, 16, 16) -> (2, 8, 128); per-batch = 1024 -------
    outer_shape = (8, 128)
    x = jax.random.normal(key, (2, 4, 16, 16), dtype=jnp.float32)
    y = pallas_reshape(x, outer_shape)
    y = jax.block_until_ready(y)
    y_ref = jnp.reshape(x, (x.shape[0],) + outer_shape)
    assert y.shape == (2, 8, 128), y.shape
    assert y.dtype == x.dtype
    np.testing.assert_array_equal(np.asarray(y), np.asarray(y_ref))

    # --- case 2: ragged trailing size (not a multiple of 128) ---------------
    # (2, 3, 5, 7) -> (2, 7, 15); no padding needed with the HBM->HBM DMA path.
    x2 = jax.random.normal(jax.random.PRNGKey(1), (2, 3, 5, 7),
                           dtype=jnp.float32)
    y2 = pallas_reshape(x2, (7, 15))
    y2 = jax.block_until_ready(y2)
    y2_ref = jnp.reshape(x2, (2, 7, 15))
    assert y2.shape == (2, 7, 15), y2.shape
    np.testing.assert_array_equal(np.asarray(y2), np.asarray(y2_ref))

    # --- case 3: narrow dtype (bf16), flatten trailing dims -----------------
    x3 = jax.random.normal(jax.random.PRNGKey(2), (2, 4, 8, 32),
                           dtype=jnp.bfloat16)
    y3 = pallas_reshape(x3, (1024,))
    y3 = jax.block_until_ready(y3)
    y3_ref = jnp.reshape(x3, (2, 1024))
    assert y3.shape == (2, 1024), y3.shape
    assert y3.dtype == jnp.bfloat16
    np.testing.assert_array_equal(np.asarray(y3), np.asarray(y3_ref))

    print("KERNEL_OK")
</pallas_src>

<mosaic_0001>
module attributes {stable_mosaic.version = 11 : i64} {
  func.func @_dma_copy_kernel(%arg0: memref<2x8x128xf32, #tpu.memory_space<any>>, %arg1: memref<2x8x128xf32, #tpu.memory_space<any>>, %arg2: memref<!tpu.dma_semaphore, #tpu.memory_space<semaphore_mem>>) attributes {dimension_semantics = [], scalar_prefetch = 0 : i64, scratch_operands = 1 : i64, tpu.core_type = #tpu.core_type<tc>} {
    tpu.enqueue_dma source(%arg0 : memref<2x8x128xf32, #tpu.memory_space<any>>) target(%arg1 : memref<2x8x128xf32, #tpu.memory_space<any>>) target_semaphore(%arg2 : memref<!tpu.dma_semaphore, #tpu.memory_space<semaphore_mem>>)
    tpu.wait_dma2 semaphore(%arg2 : memref<!tpu.dma_semaphore, #tpu.memory_space<semaphore_mem>>) src(%arg0 : memref<2x8x128xf32, #tpu.memory_space<any>>) dst(%arg1 : memref<2x8x128xf32, #tpu.memory_space<any>>)
    return
  }
}

</mosaic_0001>

<llo_original>
// kernel: _pallas_reshape_impl.1
$region0: #{_pallas_reshape_impl.1}
  #allocation0 [shape = 'u32[]', space=smem, size = 0x4, offset = 0x4, fixed_abs, tag = 'smem constant byte address 0x4 - core index']
  #allocation1 [shape = 'u32[144,128]{1,0:T(1,128)}', space=vmem, size = 0x12000, scoped, tag = 'internal scratch']
  #allocation2 [shape = 's32[1]{0}', space=sflag, size = 0x4, scoped, tag = 'scratch operand']
  #allocation3 [shape = 's32[]', space=sflag, size = 0x4, offset = 0, fixed_abs, tag = 'sflag constant byte address 0x0 - dummy sync flag']
  #allocation4 [shape = 's32[]', space=sflag, size = 0x4, offset = 0, fixed_abs, tag = 'sflag constant byte address 0x0 - dummy sync flag']
  #allocation5 [shape = 'u32[]', space=smem, size = 0x4, offset = 0x44, fixed_abs, tag = 'smem constant byte address 0x44 - assertion arg 0']
  #allocation6 [shape = 'u32[]', space=smem, size = 0x4, offset = 0x48, fixed_abs, tag = 'smem constant byte address 0x48 - assertion arg 1']
  %s0 = inlined_call_operand.vmem [shape: f32[2,8,128], index: 0, kind: input, shape index: {}]
  %s1 = inlined_call_operand.hbm [shape: f32[2,8,128], index: 1, kind: output, shape index: {}]
  %s2 = sld [smem:[#allocation0]]
  $region6: #{_pallas_reshape_impl.1} parent=0
    _
  %s4 = ssub.s32 1, %s2
  %s5 = scalar_select 0, %s4, %s2
  // Predicated region
  $region2: #{_pallas_reshape_impl.1} parent=0 // pred_check
    _
  $region3: #{_pallas_reshape_impl.1} parent=0 // pred_check_branch
    %7 = sbr.rel target = $region5
  $region4: #{_pallas_reshape_impl.1} parent=0 // pred_region
    %8 = sst [smem:[#allocation5]] [#allocation4]
    %9 = sst [smem:[#allocation6]] [#allocation3]
  $region5: #{_pallas_reshape_impl.1} parent=0 // pred_fallthru
    _
  %11 = shalt.err (0)
  %s13 = sshll.u32 %s0, 4
  %s14 = int_to_ptr.vmem [resolvable:$true] %s13
  %16 = dma.vmem_to_hbm [thread:$0]  %s14, 256, %s1, [#allocation2]
  %s17 = smul.u32 2, 8
  %s18 = smul.u32 %s17, 1
  %s19 = sshll.u32 %s18, 4
  %20 = dma.done [#allocation2], %s19
  %21 = vsyncmov [#allocation2]
  %s22 = vpop.sfrf %21
  %p23 = scmp.eq.s32.totalorder %s22, 0
  %p24 = pneg %p23
  %26 = shalt.err (%p24)

</llo_original>
